<compile_context>
chip_gen: v7x
topology: tpu7x:2x2x1
jax: 0.10.0
libtpu: 0.0.40
codegen_flags: <defaults>
</compile_context>

<pallas_src>
import math

import jax
import jax.numpy as jnp
import numpy as np
from jax.experimental import pallas as pl
from jax.experimental.pallas import tpu as pltpu


def _time_mask_kernel(x_ref, keep_ref, o_ref):
    # x_ref / o_ref: (tile_t, tile_d) VMEM tiles.
    # keep_ref:      (tile_t, 1) int32 per-row keep flag (1 = keep, 0 = zero).
    keep = keep_ref[...] != 0
    o_ref[...] = jnp.where(keep, x_ref[...], jnp.zeros_like(x_ref[...]))


def _round_up(x, m):
    return ((x + m - 1) // m) * m


def _round_down(x, m):
    return (x // m) * m


def _sublane_granularity(dtype):
    itemsize = jnp.dtype(dtype).itemsize
    if itemsize >= 4:
        return 8
    if itemsize == 2:
        return 16
    return 32                      # int8 / fp8 need (32, 128) minimum tiles


def _choose_tiles(T, D, dtype, target_tile_bytes=4 * 1024 * 1024):
    gran = _sublane_granularity(dtype)
    itemsize = jnp.dtype(dtype).itemsize

    # Lane (minor) tile: multiple of 128, or the full dim when D is small /
    # not a multiple of 128 (no host-side padding; partial edge blocks are
    # masked by Pallas).
    if D % 128 == 0:
        tile_d = min(1024, D)
    elif D <= 2048:
        tile_d = D
    else:
        tile_d = 1024

    # Sublane tile: as many rows as fit the per-buffer VMEM byte target,
    # accounting for the 128-lane padding of the VMEM layout.
    lane_pad = _round_up(tile_d, 128)
    rows = max(gran, _round_down(target_tile_bytes // (lane_pad * itemsize), gran))
    tile_t = min(rows, _round_up(T, gran))

    # v7x megacore: keep >= 2 steps on the leading "parallel" axis so both
    # TensorCores get work (harmless on single-core v5e/v6e).
    if pl.cdiv(T, tile_t) < 2 and T >= 2 * gran:
        tile_t = _round_up(pl.cdiv(T, 2), gran)

    return tile_t, tile_d


def adaptive_time_mask(x, starts, ends):
    """Zero out rows t of x (time = dim 0) where starts[i] <= t < ends[i]."""
    orig_shape = x.shape
    T = x.shape[0]
    D = math.prod(x.shape[1:]) if x.ndim > 1 else 1
    x2 = x.reshape(T, D)           # metadata-only for contiguous x

    # Hoisted keep-mask (pure JAX): one lane-dense (T, n_mask) compare+reduce.
    idx = jnp.arange(T, dtype=jnp.int32)[:, None]                 # (T, 1)
    hit = (idx >= starts[None, :]) & (idx < ends[None, :])        # (T, n_mask)
    keep = jnp.logical_not(jnp.any(hit, axis=1, keepdims=True))   # (T, 1)
    keep = keep.astype(jnp.int32)

    tile_t, tile_d = _choose_tiles(T, D, x.dtype)
    grid = (pl.cdiv(T, tile_t), pl.cdiv(D, tile_d))
    itemsize = jnp.dtype(x.dtype).itemsize

    out = pl.pallas_call(
        _time_mask_kernel,
        out_shape=jax.ShapeDtypeStruct((T, D), x.dtype),
        grid=grid,
        in_specs=[
            pl.BlockSpec((tile_t, tile_d), lambda i, j: (i, j)),
            pl.BlockSpec((tile_t, 1), lambda i, j: (i, 0)),
        ],
        out_specs=pl.BlockSpec((tile_t, tile_d), lambda i, j: (i, j)),
        compiler_params=pltpu.CompilerParams(
            dimension_semantics=("parallel", "parallel"),
            vmem_limit_bytes=48 * 1024 * 1024,
        ),
        cost_estimate=pl.CostEstimate(
            flops=T * D,                                  # one select / elem
            transcendentals=0,
            bytes_accessed=2 * T * D * itemsize + T * 4,
        ),
    )(x2, keep)

    return out.reshape(orig_shape)


def sample_mask_intervals(key, length, window, stride):
    """Deterministically sample (starts, ends) matching the torch semantics."""
    n_mask = int((length + stride - 0.1) // stride)
    k_ts, k_start = jax.random.split(key)
    ts = jax.random.randint(k_ts, (n_mask, 2), 0, window, dtype=jnp.int32)
    t = ts[:, 0]
    t_len = ts[:, 1]
    # random.randrange(0, length - t): uniform integer in [0, length - t).
    span = jnp.maximum(length - t, 1)
    t_start = jax.random.randint(k_start, (n_mask,), 0, span, dtype=jnp.int32)
    valid = (length - t > 0) & (t > 0)   # the two `continue` branches in torch
    starts = jnp.where(valid, t_start, 0)
    ends = jnp.where(valid, jnp.minimum(t_start + t_len, length), 0)
    return starts, ends


def _check_case(key, shape, window, stride):
    k_x, k_mask = jax.random.split(key)
    x = jax.random.normal(k_x, shape, dtype=jnp.float32)
    T = shape[0]
    starts, ends = sample_mask_intervals(k_mask, T, window, stride)

    out = adaptive_time_mask(x, starts, ends)
    out = jax.block_until_ready(out)

    # Independent numpy reference using the same concrete intervals.
    x_np = np.asarray(jax.device_get(x))
    s_np = np.asarray(jax.device_get(starts))
    e_np = np.asarray(jax.device_get(ends))
    ref = x_np.copy()
    for s, e in zip(s_np, e_np):
        ref[int(s):int(e)] = 0.0
    assert np.array_equal(np.asarray(jax.device_get(out)), ref), \
        f"mismatch vs reference for shape {shape}"


if __name__ == "__main__":
    window, stride = 3, 4
    key = jax.random.PRNGKey(0)
    k1, k2 = jax.random.split(key)

    # Typical spec-augment layout: (time, mel_bins).
    _check_case(k1, (64, 80), window, stride)
    # Non-aligned T (partial sublane block) and 3-D feature dims.
    _check_case(k2, (50, 5, 40), window, stride)

    print("KERNEL_OK")
</pallas_src>

<mosaic_0001>
module attributes {stable_mosaic.version = 11 : i64} {
  func.func @_time_mask_kernel(%arg0: i32, %arg1: i32, %arg2: memref<32x80xf32, #tpu.memory_space<vmem>>, %arg3: memref<32x1xi32, #tpu.memory_space<vmem>>, %arg4: memref<32x80xf32, #tpu.memory_space<vmem>>) attributes {dimension_semantics = [#tpu.dimension_semantics<parallel>, #tpu.dimension_semantics<parallel>], iteration_bounds = array<i64: 2, 1>, scalar_prefetch = 0 : i64, scratch_operands = 0 : i64, tpu.core_type = #tpu.core_type<tc>, window_params = [{transform_indices = @transform_0, window_bounds = array<i64: 32, 80>}, {transform_indices = @transform_1, window_bounds = array<i64: 32, 1>}, {transform_indices = @transform_2, window_bounds = array<i64: 32, 80>}]} {
    %c0 = arith.constant 0 : index
    %c0_0 = arith.constant 0 : index
    %0 = vector.load %arg3[%c0, %c0_0] : memref<32x1xi32, #tpu.memory_space<vmem>>, vector<32x1xi32>
    %c0_i32 = arith.constant 0 : i32
    %1 = vector.broadcast %c0_i32 : i32 to vector<32x1xi32>
    %2 = arith.cmpi ne, %0, %1 : vector<32x1xi32>
    %c0_1 = arith.constant 0 : index
    %c0_2 = arith.constant 0 : index
    %3 = vector.load %arg2[%c0_1, %c0_2] : memref<32x80xf32, #tpu.memory_space<vmem>>, vector<32x80xf32>
    %cst = arith.constant 0.000000e+00 : f32
    %4 = vector.broadcast %cst : f32 to vector<32x80xf32>
    %5 = vector.shape_cast %2 : vector<32x1xi1> to vector<32x1xi1>
    %6 = vector.broadcast %5 : vector<32x1xi1> to vector<32x80xi1>
    %7 = arith.select %6, %3, %4 : vector<32x80xi1>, vector<32x80xf32>
    %c0_3 = arith.constant 0 : index
    %c0_4 = arith.constant 0 : index
    %8 = vector.load %arg4[%c0_3, %c0_4] : memref<32x80xf32, #tpu.memory_space<vmem>>, vector<32x80xf32>
    tpu.vector_store %arg4[%c0_3, %c0_4], %7 {strides = array<i32>} : memref<32x80xf32, #tpu.memory_space<vmem>>, vector<32x80xf32>,
    return
  }
  func.func @transform_0(%arg0: i32, %arg1: i32) -> (i32, i32) {
    %c0_i32 = arith.constant 0 : i32
    return %arg0, %arg1 : i32, i32
  }
  func.func @transform_1(%arg0: i32, %arg1: i32) -> (i32, i32) {
    %c0_i32 = arith.constant 0 : i32
    %c0_i32_0 = arith.constant 0 : i32
    return %arg0, %c0_i32 : i32, i32
  }
  func.func @transform_2(%arg0: i32, %arg1: i32) -> (i32, i32) {
    %c0_i32 = arith.constant 0 : i32
    return %arg0, %arg1 : i32, i32
  }
}

</mosaic_0001>

<llo_original>
// kernel: tpu_custom_call.1
$region0: #{tpu_custom_call.1}
  #allocation0 [shape = 'u32[]', space=smem, size = 0x4, offset = 0x4, fixed_abs, tag = 'smem constant byte address 0x4 - core index']
  #allocation1 [shape = 'u32[144,128]{1,0:T(1,128)}', space=vmem, size = 0x12000, scoped, tag = 'internal scratch']
  %s0 = inlined_call_operand.vmem [shape: f32[64,80], index: 0, kind: input, shape index: {}]
  %s1 = inlined_call_operand.vmem [shape: s32[64,1], index: 1, kind: input, shape index: {}]
  %s2 = inlined_call_operand.hbm [shape: f32[64,80], index: 2, kind: output, shape index: {}]
  %s3 = sld [smem:[#allocation0]]
  $region41: #{tpu_custom_call.1} parent=0
    _
  %s5 = ssub.s32 1, %s3
  %s6 = scalar_select 0, %s5, %s3
  $region1: #{tpu_custom_call.1} parent=0
    #allocation2 [shape = 'u8[32768]{0}', space=vmem, size = 0x8000, scoped, tag = 'output window, operand 0']
    #allocation3 [shape = 's32[2]{0}', space=sflag, size = 0x8, scoped, tag = 'scoped memory for tpu_custom_call.1']
    %7 = vsyncpa [#allocation3], 0
    %s8 = scalar_lea.sflag [#allocation3], 1
    %9 = vsyncpa %s8, 0
    loop: start=0, step=1, limit=4
    $region2: #{tpu_custom_call.1} parent=1 // loop_pre_header
      _
    $region3: #{tpu_custom_call.1} parent=1 // loop_header
      %s11 = sphi 0, %s15
      %p12 = scmp.ge.s32.totalorder %s11, 4
      %s18 = sphi 0, %s30
      %s19 = sphi 0, %s26
      %s20 = sphi 0, %s18
      %s21 = sphi 0, %s19
      %s22 = sphi 0, %s20
      %s23 = sphi 0, %s21
      %s35 = sphi 0, %s37
      %s38 = sphi 0, %s35
      %s39 = sphi 0, %s38
      %s55 = sphi 0, %s39
      %s61 = sphi 0, %s63
      %s64 = sphi 0, %s61
      %s65 = sphi 0, %s64
      %s81 = sphi 0, %s65
      %s89 = sphi 0, %s91
      %s92 = sphi 0, %s89
      %s93 = sphi 0, %s92
      %s109 = sphi 0, %s93
    $region4: #{tpu_custom_call.1} parent=1 // loop_header_branch
      %14 = sbr.rel (%p12) target = $region8
    $region5: #{tpu_custom_call.1} parent=1 // loop_body
      %s16 = ssub.s32 %s11, 1
      %s17 = ssub.s32 %s11, 2
      %s24 = sadd.s32 1, %s19
      %p25 = scmp.ge.s32.totalorder %s24, 1
      %s26 = scalar_select %p25, 0, %s24
      %s27 = sadd.s32 1, %s18
      %s28 = scalar_select %p25, %s27, %s18
      %p29 = scmp.ge.s32.totalorder %s28, 2
      %s30 = scalar_select %p29, 0, %s28
      %s31 = ssub.s32 %s18, %s30
      %s32 = ssub.s32 %s19, %s26
      %s33 = sor.u32 %s31, %s32
      %p34 = scmp.eq.s32.totalorder %s33, 0
      %s36 = sadd.s32 %s35, 1
      %s37 = scalar_select %p34, %s35, %s36
      %p40 = pneg %p34
      %p41 = scmp.eq.s32.totalorder %s11, 1
      %p42 = por %p40, %p41
      %p43 = scmp.ne.s32.totalorder %s35, %s38
      %p44 = scmp.eq.s32.totalorder %s11, 0
      %p45 = por %p43, %p44
      %p46 = scmp.ne.s32.totalorder %s35, %s38
      %p47 = scmp.eq.s32.totalorder %s16, 1
      %p48 = por %p46, %p47
      %p49 = scmp.ne.s32.totalorder %s38, %s39
      %p50 = scmp.eq.s32.totalorder %s16, 0
      %p51 = por %p49, %p50
      %p52 = scmp.ne.s32.totalorder %s38, %s39
      %p53 = scmp.eq.s32.totalorder %s17, 1
      %p54 = por %p52, %p53
      %p56 = scmp.ne.s32.totalorder %s39, %s55
      %p57 = scmp.eq.s32.totalorder %s17, 0
      %p58 = por %p56, %p57
      %s59 = ssub.s32 %s18, %s30
      %p60 = scmp.eq.s32.totalorder %s59, 0
      %s62 = sadd.s32 %s61, 1
      %s63 = scalar_select %p60, %s61, %s62
      %p66 = pneg %p60
      %p67 = scmp.eq.s32.totalorder %s11, 1
      %p68 = por %p66, %p67
      %p69 = scmp.ne.s32.totalorder %s61, %s64
      %p70 = scmp.eq.s32.totalorder %s11, 0
      %p71 = por %p69, %p70
      %p72 = scmp.ne.s32.totalorder %s61, %s64
      %p73 = scmp.eq.s32.totalorder %s16, 1
      %p74 = por %p72, %p73
      %p75 = scmp.ne.s32.totalorder %s64, %s65
      %p76 = scmp.eq.s32.totalorder %s16, 0
      %p77 = por %p75, %p76
      %p78 = scmp.ne.s32.totalorder %s64, %s65
      %p79 = scmp.eq.s32.totalorder %s17, 1
      %p80 = por %p78, %p79
      %p82 = scmp.ne.s32.totalorder %s65, %s81
      %p83 = scmp.eq.s32.totalorder %s17, 0
      %p84 = por %p82, %p83
      %s85 = ssub.s32 %s18, %s30
      %s86 = ssub.s32 %s19, %s26
      %s87 = sor.u32 %s85, %s86
      %p88 = scmp.eq.s32.totalorder %s87, 0
      %s90 = sadd.s32 %s89, 1
      %s91 = scalar_select %p88, %s89, %s90
      %p94 = pneg %p88
      %p95 = scmp.eq.s32.totalorder %s11, 1
      %p96 = por %p94, %p95
      %p97 = scmp.ne.s32.totalorder %s89, %s92
      %p98 = scmp.eq.s32.totalorder %s11, 0
      %p99 = por %p97, %p98
      %p100 = scmp.ne.s32.totalorder %s89, %s92
      %p101 = scmp.eq.s32.totalorder %s16, 1
      %p102 = por %p100, %p101
      %p103 = scmp.ne.s32.totalorder %s92, %s93
      %p104 = scmp.eq.s32.totalorder %s16, 0
      %p105 = por %p103, %p104
      %p106 = scmp.ne.s32.totalorder %s92, %s93
      %p107 = scmp.eq.s32.totalorder %s17, 1
      %p108 = por %p106, %p107
      %p110 = scmp.ne.s32.totalorder %s93, %s109
      %p111 = scmp.eq.s32.totalorder %s17, 0
      %p112 = por %p110, %p111
      %p113 = scmp.le.s32.totalorder 1, %s11
      %p114 = scmp.lt.s32.totalorder %s11, 3
      %p115 = pnand %p113, %p114
      %p116 = pneg %p115
      // Predicated region
      $region9: #{tpu_custom_call.1} parent=5 // pred_check
        _
      $region10: #{tpu_custom_call.1} parent=5 // pred_check_branch
        %118 = sbr.rel (%p115) target = $region12
      $region11: #{tpu_custom_call.1} parent=5 // pred_region
        %s119 = ssub.s32 %s11, 1
      $region12: #{tpu_custom_call.1} parent=5 // pred_fallthru
        _
      %p120 = scmp.lt.s32.totalorder %s11, 2
      // Predicated region
      $region13: #{tpu_custom_call.1} parent=5 // pred_check
        %p121 = pneg %p120
      $region14: #{tpu_custom_call.1} parent=5 // pred_check_branch
        %123 = sbr.rel (%p121) target = $region16
      $region15: #{tpu_custom_call.1} parent=5 // pred_region
        // Predicated region
        $region17: #{tpu_custom_call.1} parent=15 // pred_check
          %p124 = pneg %p45
        $region18: #{tpu_custom_call.1} parent=15 // pred_check_branch
          %126 = sbr.rel (%p124) target = $region20
        $region19: #{tpu_custom_call.1} parent=15 // pred_region
          %s127 = smul.u32 4, %s18
          %p128 = scmp.lt.s32.totalorder %s127, 7
          %s129 = scalar_select %p128, %s127, 7
          %p130 = scmp.lt.s32.totalorder %s19, 0
          %s131 = scalar_select %p130, %s19, 0
          %s132 = sadd.s32 %s131, %s129
          %s133 = smul.addr %s132, 8
          %s134 = scalar_lea.vmem %s0, %s133
          %s135 = smul.u32 4, %s18
        $region20: #{tpu_custom_call.1} parent=15 // pred_fallthru
          _
        // Predicated region
        $region21: #{tpu_custom_call.1} parent=15 // pred_check
          %p136 = pneg %p71
        $region22: #{tpu_custom_call.1} parent=15 // pred_check_branch
          %138 = sbr.rel (%p136) target = $region24
        $region23: #{tpu_custom_call.1} parent=15 // pred_region
          %s139 = smul.u32 4, %s18
          %p140 = scmp.lt.s32.totalorder %s139, 7
          %s141 = scalar_select %p140, %s139, 7
          %s142 = smul.addr %s141, 8
          %s143 = scalar_lea.vmem %s1, %s142
          %s144 = smul.u32 4, %s18
        $region24: #{tpu_custom_call.1} parent=15 // pred_fallthru
          _
      $region16: #{tpu_custom_call.1} parent=5 // pred_fallthru
        _
      %p145 = scmp.le.s32.totalorder 1, %s11
      %p146 = scmp.lt.s32.totalorder %s11, 3
      %p147 = pnand %p145, %p146
      %p148 = pneg %p147
      // Predicated region
      $region25: #{tpu_custom_call.1} parent=5 // pred_check
        _
      $region26: #{tpu_custom_call.1} parent=5 // pred_check_branch
        %150 = sbr.rel (%p147) target = $region28
      $region27: #{tpu_custom_call.1} parent=5 // pred_region
        %s151 = ssub.s32 %s11, 1
        %s152 = smul.u32 4, %s20
        %p153 = scmp.lt.s32.totalorder %s152, 7
        %s154 = scalar_select %p153, %s152, 7
        %p155 = scmp.lt.s32.totalorder %s21, 0
        %s156 = scalar_select %p155, %s21, 0
        %s157 = sadd.s32 %s156, %s154
        %s158 = smul.addr %s157, 8
        %s159 = scalar_lea.vmem %s0, %s158
        %p160 = pneg %p51
        %p161 = pneg %p48
        %s162 = smul.u32 4, %s20
        %p163 = scmp.lt.s32.totalorder %s162, 7
        %s164 = scalar_select %p163, %s162, 7
        %s165 = smul.addr %s164, 8
        %s166 = scalar_lea.vmem %s1, %s165
        %p167 = pneg %p77
        %p168 = pneg %p74
        %p169 = pneg %p105
        %p170 = pneg %p102
        %s171 = sand.u32 %s92, 1
        %s172 = scalar_lea.sflag [#allocation3], %s171
        %s173 = sand.u32 %s92, 1
        %s174 = smul.addr %s173, 32
        %s175 = scalar_lea.vmem [#allocation2], %s174
        %s176 = smul.u32 4, %s20
        %p177 = scmp.lt.s32.totalorder %s176, 7
        %s178 = scalar_select %p177, %s176, 7
        %p179 = scmp.lt.s32.totalorder %s21, 0
        %s180 = scalar_select %p179, %s21, 0
        %s181 = sadd.s32 %s180, %s178
        %s182 = smul.addr %s181, 8
        %s183 = scalar_lea.vmem %s0, %s182
        %s184 = smul.u32 4, %s20
        %s185 = smul.u32 4, %s20
        %p186 = scmp.lt.s32.totalorder %s185, 7
        %s187 = scalar_select %p186, %s185, 7
        %s188 = smul.addr %s187, 8
        %s189 = scalar_lea.vmem %s1, %s188
        %s190 = smul.u32 4, %s20
        %s191 = smul.u32 4, %s20
        %v192 = vld [vmem:[%s189] sm:$0xff]
        %v193 = vld [vmem:[%s189 + $0x8] sm:$0xff]
        %v194 = vld [vmem:[%s189 + $0x10] sm:$0xff]
        %v195 = vld [vmem:[%s189 + $0x18] sm:$0xff]
        %vm196 = vcmp.ne.s32.totalorder %v192, 0
        %vm197 = vcmp.ne.s32.totalorder %v193, 0
        %vm198 = vcmp.ne.s32.totalorder %v194, 0
        %vm199 = vcmp.ne.s32.totalorder %v195, 0
        %v200 = vld [vmem:[%s183] sm:$0xff]
        %v201 = vld [vmem:[%s183 + $0x8] sm:$0xff]
        %v202 = vld [vmem:[%s183 + $0x10] sm:$0xff]
        %v203 = vld [vmem:[%s183 + $0x18] sm:$0xff]
        %v204 = vsel %vm196, 1, 0
        %v205 = vsel %vm197, 1, 0
        %v206 = vsel %vm198, 1, 0
        %v207 = vsel %vm199, 1, 0
        %208 = vset.pattern.permute.xlu0 0
        %209 = vperm.xlu0 %208, %v204
        %v210 = vpop.permute.xlu0 %209
        %211 = vset.pattern.permute.xlu0 0
        %212 = vperm.xlu0 %211, %v205
        %v213 = vpop.permute.xlu0 %212
        %214 = vset.pattern.permute.xlu0 0
        %215 = vperm.xlu0 %214, %v206
        %v216 = vpop.permute.xlu0 %215
        %217 = vset.pattern.permute.xlu0 0
        %218 = vperm.xlu0 %217, %v207
        %v219 = vpop.permute.xlu0 %218
        %vm220 = vcmp.eq.s32.totalorder %v210, 1
        %vm221 = vcmp.eq.s32.totalorder %v213, 1
        %vm222 = vcmp.eq.s32.totalorder %v216, 1
        %vm223 = vcmp.eq.s32.totalorder %v219, 1
        %v224 = vsel %vm220, %v200, 0.0
        %v225 = vsel %vm221, %v201, 0.0
        %v226 = vsel %vm222, %v202, 0.0
        %v227 = vsel %vm223, %v203, 0.0
        %vm228 = vcmask 654336
        %229 = vst.msk [vmem:[%s175] sm:$0xff] %vm228, %v224
        %230 = vst.msk [vmem:[%s175 + $0x8] sm:$0xff] %vm228, %v225
        %231 = vst.msk [vmem:[%s175 + $0x10] sm:$0xff] %vm228, %v226
        %232 = vst.msk [vmem:[%s175 + $0x18] sm:$0xff] %vm228, %v227
        %s233 = sand.u32 %s92, 1
        %s234 = scalar_lea.sflag [#allocation3], %s233
        %s235 = sand.u32 %s92, 1
        %s236 = smul.addr %s235, 32
        %s237 = scalar_lea.vmem [#allocation2], %s236
        // Predicated region
        $region29: #{tpu_custom_call.1} parent=27 // pred_check
          %p238 = pneg %p102
        $region30: #{tpu_custom_call.1} parent=27 // pred_check_branch
          %240 = sbr.rel (%p238) target = $region32
        $region31: #{tpu_custom_call.1} parent=27 // pred_region
          %s241 = smul.u32 4, %s20
          %s243 = ssub.s32 512, 512
          %244 = vsyncadd %s234, %s243
          %s245 = sadd.s32 %s21, %s241
          %s246 = smul.addr %s245, 128
          %s247 = scalar_lea.hbm %s2, %s246
          %s248 = sshll.u32 %s237, 4
          %s249 = int_to_ptr.vmem [resolvable:$true] %s248
          %254 = dma.vmem_to_hbm [thread:$0]  %s249, 512, %s247, %s234, 128, 128, 8
        $region32: #{tpu_custom_call.1} parent=27 // pred_fallthru
          _
      $region28: #{tpu_custom_call.1} parent=5 // pred_fallthru
        _
      %p255 = scmp.le.s32.totalorder 2, %s11
      // Predicated region
      $region33: #{tpu_custom_call.1} parent=5 // pred_check
        %p256 = pneg %p255
      $region34: #{tpu_custom_call.1} parent=5 // pred_check_branch
        %258 = sbr.rel (%p256) target = $region36
      $region35: #{tpu_custom_call.1} parent=5 // pred_region
        %s259 = ssub.s32 %s11, 2
        // Predicated region
        $region37: #{tpu_custom_call.1} parent=35 // pred_check
          %p260 = pneg %p108
        $region38: #{tpu_custom_call.1} parent=35 // pred_check_branch
          %262 = sbr.rel (%p260) target = $region40
        $region39: #{tpu_custom_call.1} parent=35 // pred_region
          %s263 = sand.u32 %s93, 1
          %s264 = scalar_lea.sflag [#allocation3], %s263
          %s265 = sand.u32 %s93, 1
          %s266 = smul.addr %s265, 32
          %s267 = scalar_lea.vmem [#allocation2], %s266
          %268 = dma.done %s264, 512
        $region40: #{tpu_custom_call.1} parent=35 // pred_fallthru
          _
      $region36: #{tpu_custom_call.1} parent=5 // pred_fallthru
        _
    $region6: #{tpu_custom_call.1} parent=1 // loop_footer
      %s15 = sadd.s32 1, %s11
    $region7: #{tpu_custom_call.1} parent=1 // loop_footer_branch
      %10 = sbr.rel target = $region3
    $region8: #{tpu_custom_call.1} parent=1 // loop_exit
      _
    %269 = vsyncpa [#allocation3], 1
    %s270 = scalar_lea.sflag [#allocation3], 1
    %271 = vsyncpa %s270, 1

</llo_original>
